<compile_context>
chip_gen: v6e
topology: v6e:2x2x1
jax: 0.10.0
libtpu: 0.0.40
codegen_flags: <defaults>
</compile_context>

<pallas_src>
import functools

import jax
import jax.numpy as jnp
from jax.experimental import pallas as pl
from jax.experimental.pallas import tpu as pltpu


def _round_up(v, m):
    return -(-v // m) * m


def _kernel_shortcut(x_ref, w0_ref, b0_ref, w1_ref, b1_ref, ws_ref, o_ref,
                     *, compute_dtype):
    """size_in != size_out: shortcut is a bias-free Linear."""
    x = x_ref[...]
    h = jnp.maximum(x, 0.0).astype(compute_dtype)            # actvn(x)
    net = jnp.dot(h, w0_ref[...],
                  preferred_element_type=jnp.float32) + b0_ref[...]   # fc_0
    net_a = jnp.maximum(net, 0.0).astype(compute_dtype)      # actvn(net)
    dx = jnp.dot(net_a, w1_ref[...],
                 preferred_element_type=jnp.float32) + b1_ref[...]    # fc_1
    x_s = jnp.dot(x.astype(compute_dtype), ws_ref[...],
                  preferred_element_type=jnp.float32)                 # shortcut
    o_ref[...] = (x_s + dx).astype(o_ref.dtype)


def _kernel_identity(x_ref, w0_ref, b0_ref, w1_ref, b1_ref, o_ref,
                     *, compute_dtype):
    """size_in == size_out: shortcut is identity."""
    x = x_ref[...]
    h = jnp.maximum(x, 0.0).astype(compute_dtype)
    net = jnp.dot(h, w0_ref[...],
                  preferred_element_type=jnp.float32) + b0_ref[...]
    net_a = jnp.maximum(net, 0.0).astype(compute_dtype)
    dx = jnp.dot(net_a, w1_ref[...],
                 preferred_element_type=jnp.float32) + b1_ref[...]
    o_ref[...] = (x + dx).astype(o_ref.dtype)


def resnet_block_fc(x, params, *, tile_rows=512, use_bf16_matmul=True):
    """Apply the ResnetBlockFC forward pass.

    x: array of shape (..., size_in).
    params: dict with
        'w0' (size_in, size_h), 'b0' (size_h,),
        'w1' (size_h, size_out), 'b1' (size_out,),
        optional 'ws' (size_in, size_out)  (present iff size_in != size_out)
    """
    w0, b0 = params["w0"], params["b0"]
    w1, b1 = params["w1"], params["b1"]
    ws = params.get("ws", None)

    size_in, size_h = w0.shape
    size_out = w1.shape[1]
    assert x.shape[-1] == size_in

    lead_shape = x.shape[:-1]
    n = 1
    for d in lead_shape:
        n *= d
    x2 = x.reshape(n, size_in)

    compute_dtype = jnp.bfloat16 if use_bf16_matmul else jnp.float32

    # ---- lane-dense feature padding (tiny weight/bias tensors only) --------
    LANE = 128
    size_h_p = _round_up(size_h, LANE)
    # Identity shortcut ties the output width to x's width -> keep unpadded
    # (padding would force an extra HBM pass over x or the output).
    size_out_p = _round_up(size_out, LANE) if ws is not None else size_out

    def pad2(a, rows, cols):
        pr, pc = rows - a.shape[0], cols - a.shape[1]
        if pr or pc:
            a = jnp.pad(a, ((0, pr), (0, pc)))   # zero pad -> extra lanes inert
        return a

    w0_p = pad2(w0, size_in, size_h_p).astype(compute_dtype)
    w1_p = pad2(w1, size_h_p, size_out_p).astype(compute_dtype)
    b0_p = pad2(b0.reshape(1, size_h), 1, size_h_p).astype(jnp.float32)
    b1_p = pad2(b1.reshape(1, size_out), 1, size_out_p).astype(jnp.float32)
    ws_p = (pad2(ws, size_in, size_out_p).astype(compute_dtype)
            if ws is not None else None)

    # ---- row tiling: no data padding; Pallas masks the ragged last block ---
    min_rows = 16 if jnp.dtype(x.dtype).itemsize < 4 else 8
    tm = max(min_rows,
             min(int(tile_rows),
                 max(min_rows, _round_up(-(-n // 2), min_rows))))
    tm = _round_up(tm, min_rows)

    # ---- explicit VMEM budgeting (v7x has only 64 MiB of VMEM) -------------
    def _vmem_est(rows):
        itx = jnp.dtype(x.dtype).itemsize
        itc = jnp.dtype(compute_dtype).itemsize
        wbytes = (size_in * size_h_p + size_h_p * size_out_p
                  + (size_in * size_out_p if ws is not None else 0)) * itc
        bbytes = (size_h_p + size_out_p) * 4
        tiles = 2 * rows * size_in * itx + 2 * rows * size_out_p * itx
        interm = rows * (size_h_p + size_out_p) * 4
        return tiles + 2 * (wbytes + bbytes) + interm

    MAX_TILE_VMEM = 48 * 1024 * 1024
    while tm > min_rows and _vmem_est(tm) > MAX_TILE_VMEM:
        tm = max(min_rows, _round_up(tm // 2, min_rows))

    grid = (-(-n // tm),)                       # pl.cdiv(n, tm)
    vmem_limit = int(min(64 * 1024 * 1024,
                         max(32 * 1024 * 1024, 2 * _vmem_est(tm))))

    full = lambda r, c: pl.BlockSpec((r, c), lambda i: (0, 0))
    in_specs = [
        pl.BlockSpec((tm, size_in), lambda i: (i, 0)),   # x row tile
        full(size_in, size_h_p),                          # w0
        full(1, size_h_p),                                # b0
        full(size_h_p, size_out_p),                       # w1
        full(1, size_out_p),                              # b1
    ]
    operands = [x2, w0_p, b0_p, w1_p, b1_p]
    if ws is not None:
        in_specs.append(full(size_in, size_out_p))        # shortcut weight
        operands.append(ws_p)
        kernel = functools.partial(_kernel_shortcut, compute_dtype=compute_dtype)
    else:
        kernel = functools.partial(_kernel_identity, compute_dtype=compute_dtype)

    out = pl.pallas_call(
        kernel,
        out_shape=jax.ShapeDtypeStruct((n, size_out_p), x.dtype),
        grid=grid,
        in_specs=in_specs,
        out_specs=pl.BlockSpec((tm, size_out_p), lambda i: (i, 0)),
        compiler_params=pltpu.CompilerParams(
            dimension_semantics=("parallel",),
            vmem_limit_bytes=vmem_limit),
    )(*operands)

    if size_out_p != size_out:
        out = out[:, :size_out]
    return out.reshape(*lead_shape, size_out)


def init_resnet_block_fc_params(key, size_in, size_out=None, size_h=None,
                                dtype=jnp.float32):
    """Synthetic params mirroring the PyTorch __init__ shapes.
    fc_1.weight is zero-initialized exactly as in the module; other params use
    nn.Linear-style uniform inits."""
    if size_out is None:
        size_out = size_in
    if size_h is None:
        size_h = min(size_in, size_out)

    k0w, k0b, k1b, ksw = jax.random.split(key, 4)
    bnd0 = 1.0 / jnp.sqrt(size_in)
    bnd1 = 1.0 / jnp.sqrt(size_h)

    params = {
        # stored transposed: (in_features, out_features)
        "w0": jax.random.uniform(k0w, (size_in, size_h), dtype, -bnd0, bnd0),
        "b0": jax.random.uniform(k0b, (size_h,), dtype, -bnd0, bnd0),
        "w1": jnp.zeros((size_h, size_out), dtype),        # nn.init.zeros_
        "b1": jax.random.uniform(k1b, (size_out,), dtype, -bnd1, bnd1),
    }
    if size_in != size_out:
        params["ws"] = jax.random.uniform(ksw, (size_in, size_out), dtype,
                                          -bnd0, bnd0)
    return params


def _reference(x, params):
    """Pure-JAX f32 reference for correctness check."""
    relu = lambda v: jnp.maximum(v, 0.0)
    net = relu(x) @ params["w0"] + params["b0"]
    dx = relu(net) @ params["w1"] + params["b1"]
    x_s = x @ params["ws"] if "ws" in params else x
    return x_s + dx


if __name__ == "__main__":
    key = jax.random.PRNGKey(0)
    kx, kp1, kp2, kx3 = jax.random.split(key, 4)

    # Case 1: size_in != size_out (Linear shortcut), input (2, 8, 32).
    size_in, size_h, size_out = 32, 32, 64
    x = jax.random.normal(kx, (2, 8, size_in), jnp.float32)
    params = init_resnet_block_fc_params(kp1, size_in, size_out, size_h)
    ref = _reference(x, params)

    # 1a: exact f32 path (tight tolerance).
    out_f32 = jax.block_until_ready(
        resnet_block_fc(x, params, use_bf16_matmul=False))
    assert out_f32.shape == (2, 8, size_out)
    assert jnp.allclose(out_f32, ref, atol=1e-5, rtol=1e-5)

    # 1b: bf16 MXU path (loose tolerance vs f32 reference).
    out_bf16 = jax.block_until_ready(
        resnet_block_fc(x, params, use_bf16_matmul=True))
    assert out_bf16.shape == (2, 8, size_out)
    assert jnp.allclose(out_bf16, ref, atol=5e-2, rtol=5e-2)

    # Case 2: size_in == size_out (identity shortcut), bf16 path.
    params2 = init_resnet_block_fc_params(kp2, size_in)
    ref2 = _reference(x, params2)
    out2 = jax.block_until_ready(resnet_block_fc(x, params2))
    assert out2.shape == (2, 8, size_in)
    assert jnp.allclose(out2, ref2, atol=5e-2, rtol=5e-2)

    # Case 3: ragged row count (n = 15, not a multiple of the row tile) to
    # exercise Pallas boundary-block masking; exact f32 path.
    x3 = jax.random.normal(kx3, (3, 5, size_in), jnp.float32)
    ref3 = _reference(x3, params2)
    out3 = jax.block_until_ready(
        resnet_block_fc(x3, params2, use_bf16_matmul=False))
    assert out3.shape == (3, 5, size_in)
    assert jnp.allclose(out3, ref3, atol=1e-5, rtol=1e-5)

    print("KERNEL_OK")
</pallas_src>

<mosaic_0001>
module attributes {stable_mosaic.version = 11 : i64} {
  func.func @_kernel_shortcut(%arg0: i32, %arg1: memref<8x32xf32, #tpu.memory_space<vmem>>, %arg2: memref<32x128xf32, #tpu.memory_space<vmem>>, %arg3: memref<1x128xf32, #tpu.memory_space<vmem>>, %arg4: memref<128x128xf32, #tpu.memory_space<vmem>>, %arg5: memref<1x128xf32, #tpu.memory_space<vmem>>, %arg6: memref<32x128xf32, #tpu.memory_space<vmem>>, %arg7: memref<8x128xf32, #tpu.memory_space<vmem>>) attributes {dimension_semantics = [#tpu.dimension_semantics<parallel>], iteration_bounds = array<i64: 2>, scalar_prefetch = 0 : i64, scratch_operands = 0 : i64, tpu.core_type = #tpu.core_type<tc>, window_params = [{transform_indices = @transform_0, window_bounds = array<i64: 8, 32>}, {pipeline_mode = #tpu.pipeline_mode<synchronous>, transform_indices = @transform_1, window_bounds = array<i64: 32, 128>}, {pipeline_mode = #tpu.pipeline_mode<synchronous>, transform_indices = @transform_2, window_bounds = array<i64: 1, 128>}, {pipeline_mode = #tpu.pipeline_mode<synchronous>, transform_indices = @transform_3, window_bounds = array<i64: 128, 128>}, {pipeline_mode = #tpu.pipeline_mode<synchronous>, transform_indices = @transform_4, window_bounds = array<i64: 1, 128>}, {pipeline_mode = #tpu.pipeline_mode<synchronous>, transform_indices = @transform_5, window_bounds = array<i64: 32, 128>}, {transform_indices = @transform_6, window_bounds = array<i64: 8, 128>}]} {
    %c0 = arith.constant 0 : index
    %c0_0 = arith.constant 0 : index
    %0 = vector.load %arg1[%c0, %c0_0] : memref<8x32xf32, #tpu.memory_space<vmem>>, vector<8x32xf32>
    %cst = arith.constant 0.000000e+00 : f32
    %1 = vector.broadcast %cst : f32 to vector<8x32xf32>
    %2 = arith.maximumf %0, %1 : vector<8x32xf32>
    %c0_1 = arith.constant 0 : index
    %c0_2 = arith.constant 0 : index
    %3 = vector.load %arg2[%c0_1, %c0_2] : memref<32x128xf32, #tpu.memory_space<vmem>>, vector<32x128xf32>
    %cst_3 = arith.constant dense<0.000000e+00> : vector<8x128xf32>
    %4 = tpu.matmul %2, %3, %cst_3 {dimension_numbers = #tpu.dot_dimension_numbers<[1], [0], [0], [1], [0, 0, 1, 1], [], []>} : vector<8x32xf32>, vector<32x128xf32>, vector<8x128xf32> -> vector<8x128xf32>
    %c0_4 = arith.constant 0 : index
    %c0_5 = arith.constant 0 : index
    %5 = vector.load %arg3[%c0_4, %c0_5] : memref<1x128xf32, #tpu.memory_space<vmem>>, vector<1x128xf32>
    %6 = vector.broadcast %5 : vector<1x128xf32> to vector<8x128xf32>
    %7 = arith.addf %4, %6 : vector<8x128xf32>
    %cst_6 = arith.constant 0.000000e+00 : f32
    %8 = vector.broadcast %cst_6 : f32 to vector<8x128xf32>
    %9 = arith.maximumf %7, %8 : vector<8x128xf32>
    %c0_7 = arith.constant 0 : index
    %c0_8 = arith.constant 0 : index
    %10 = vector.load %arg4[%c0_7, %c0_8] : memref<128x128xf32, #tpu.memory_space<vmem>>, vector<128x128xf32>
    %cst_9 = arith.constant dense<0.000000e+00> : vector<8x128xf32>
    %11 = tpu.matmul %9, %10, %cst_9 {dimension_numbers = #tpu.dot_dimension_numbers<[1], [0], [0], [1], [0, 0, 1, 1], [], []>} : vector<8x128xf32>, vector<128x128xf32>, vector<8x128xf32> -> vector<8x128xf32>
    %c0_10 = arith.constant 0 : index
    %c0_11 = arith.constant 0 : index
    %12 = vector.load %arg5[%c0_10, %c0_11] : memref<1x128xf32, #tpu.memory_space<vmem>>, vector<1x128xf32>
    %13 = vector.broadcast %12 : vector<1x128xf32> to vector<8x128xf32>
    %14 = arith.addf %11, %13 : vector<8x128xf32>
    %c0_12 = arith.constant 0 : index
    %c0_13 = arith.constant 0 : index
    %15 = vector.load %arg6[%c0_12, %c0_13] : memref<32x128xf32, #tpu.memory_space<vmem>>, vector<32x128xf32>
    %cst_14 = arith.constant dense<0.000000e+00> : vector<8x128xf32>
    %16 = tpu.matmul %0, %15, %cst_14 {dimension_numbers = #tpu.dot_dimension_numbers<[1], [0], [0], [1], [0, 0, 1, 1], [], []>} : vector<8x32xf32>, vector<32x128xf32>, vector<8x128xf32> -> vector<8x128xf32>
    %17 = arith.addf %16, %14 : vector<8x128xf32>
    %c0_15 = arith.constant 0 : index
    %c0_16 = arith.constant 0 : index
    %18 = vector.load %arg7[%c0_15, %c0_16] : memref<8x128xf32, #tpu.memory_space<vmem>>, vector<8x128xf32>
    tpu.vector_store %arg7[%c0_15, %c0_16], %17 {strides = array<i32>} : memref<8x128xf32, #tpu.memory_space<vmem>>, vector<8x128xf32>,
    return
  }
  func.func @transform_0(%arg0: i32) -> (i32, i32) {
    %c0_i32 = arith.constant 0 : i32
    %c0_i32_0 = arith.constant 0 : i32
    return %arg0, %c0_i32 : i32, i32
  }
  func.func @transform_1(%arg0: i32) -> (i32, i32) {
    %c0_i32 = arith.constant 0 : i32
    %c0_i32_0 = arith.constant 0 : i32
    %c0_i32_1 = arith.constant 0 : i32
    return %c0_i32, %c0_i32_0 : i32, i32
  }
  func.func @transform_2(%arg0: i32) -> (i32, i32) {
    %c0_i32 = arith.constant 0 : i32
    %c0_i32_0 = arith.constant 0 : i32
    %c0_i32_1 = arith.constant 0 : i32
    return %c0_i32, %c0_i32_0 : i32, i32
  }
  func.func @transform_3(%arg0: i32) -> (i32, i32) {
    %c0_i32 = arith.constant 0 : i32
    %c0_i32_0 = arith.constant 0 : i32
    %c0_i32_1 = arith.constant 0 : i32
    return %c0_i32, %c0_i32_0 : i32, i32
  }
  func.func @transform_4(%arg0: i32) -> (i32, i32) {
    %c0_i32 = arith.constant 0 : i32
    %c0_i32_0 = arith.constant 0 : i32
    %c0_i32_1 = arith.constant 0 : i32
    return %c0_i32, %c0_i32_0 : i32, i32
  }
  func.func @transform_5(%arg0: i32) -> (i32, i32) {
    %c0_i32 = arith.constant 0 : i32
    %c0_i32_0 = arith.constant 0 : i32
    %c0_i32_1 = arith.constant 0 : i32
    return %c0_i32, %c0_i32_0 : i32, i32
  }
  func.func @transform_6(%arg0: i32) -> (i32, i32) {
    %c0_i32 = arith.constant 0 : i32
    %c0_i32_0 = arith.constant 0 : i32
    return %arg0, %c0_i32 : i32, i32
  }
}

</mosaic_0001>

<llo_original>
// kernel: tpu_custom_call.1
$region0: #{tpu_custom_call.1}
  #allocation0 [shape = 'u32[]', space=smem, size = 0x4, offset = 0x4, fixed_abs, tag = 'smem constant byte address 0x4 - core index']
  #allocation1 [shape = 'u32[144,128]{1,0:T(1,128)}', space=vmem, size = 0x12000, scoped, tag = 'internal scratch']
  %s0 = inlined_call_operand.hbm [shape: f32[16,32], index: 0, kind: input, shape index: {}]
  %s1 = inlined_call_operand.hbm [shape: f32[32,128], index: 1, kind: input, shape index: {}]
  %s2 = inlined_call_operand.vmem [shape: f32[1,128], index: 2, kind: input, shape index: {}]
  %s3 = inlined_call_operand.hbm [shape: f32[128,128], index: 3, kind: input, shape index: {}]
  %s4 = inlined_call_operand.vmem [shape: f32[1,128], index: 4, kind: input, shape index: {}]
  %s5 = inlined_call_operand.hbm [shape: f32[32,128], index: 5, kind: input, shape index: {}]
  %s6 = inlined_call_operand.hbm [shape: f32[16,128], index: 6, kind: output, shape index: {}]
  %s7 = sld [smem:[#allocation0]]
  $region73: #{tpu_custom_call.1} parent=0
    _
  %s9 = ssub.s32 1, %s7
  %s10 = scalar_select 0, %s9, %s7
  $region1: #{tpu_custom_call.1} parent=0
    #allocation2 [shape = 'u8[8192]{0}', space=vmem, size = 0x2000, scoped, tag = 'input window, operand 0']
    #allocation3 [shape = 's32[2]{0}', space=sflag, size = 0x8, scoped, tag = 'scoped memory for tpu_custom_call.1']
    #allocation4 [shape = 's32[2]{0}', space=sflag, size = 0x8, scoped, tag = 'scoped memory for tpu_custom_call.1']
    #allocation5 [shape = 'u8[16384]{0}', space=vmem, size = 0x4000, scoped, tag = 'input window, operand 1, single buffered']
    #allocation6 [shape = 's32[1]{0}', space=sflag, size = 0x4, scoped, tag = 'scoped memory for tpu_custom_call.1']
    #allocation7 [shape = 'u8[65536]{0}', space=vmem, size = 0x10000, scoped, tag = 'input window, operand 3, single buffered']
    #allocation8 [shape = 'u8[16384]{0}', space=vmem, size = 0x4000, scoped, tag = 'input window, operand 5, single buffered']
    #allocation9 [shape = 's32[1]{0}', space=sflag, size = 0x4, scoped, tag = 'scoped memory for tpu_custom_call.1']
    #allocation10 [shape = 'u8[8192]{0}', space=vmem, size = 0x2000, scoped, tag = 'output window, operand 0']
    %11 = vsyncpa [#allocation3], 0
    %s12 = scalar_lea.sflag [#allocation3], 1
    %13 = vsyncpa %s12, 0
    %14 = vsyncpa [#allocation6], 0
    %15 = vsyncpa [#allocation9], 0
    %16 = vsyncpa [#allocation4], 0
    %s17 = scalar_lea.sflag [#allocation4], 1
    %18 = vsyncpa %s17, 0
    loop: start=0, step=1, limit=4
    $region2: #{tpu_custom_call.1} parent=1 // loop_pre_header
      _
    $region3: #{tpu_custom_call.1} parent=1 // loop_header
      %s20 = sphi 0, %s24
      %p21 = scmp.ge.s32.totalorder %s20, 4
      %s30 = sphi 0, %s32
      %s33 = sphi 0, %s30
      %s34 = sphi 0, %s33
      %s50 = sphi 0, %s34
      %s54 = sphi 0, %s54
      %s56 = sphi 0, %s54
      %s57 = sphi 0, %s56
      %s71 = sphi 0, %s57
      %s75 = sphi 0, %s75
      %s77 = sphi 0, %s75
      %s78 = sphi 0, %s77
      %s92 = sphi 0, %s78
      %s96 = sphi 0, %s96
      %s98 = sphi 0, %s96
      %s99 = sphi 0, %s98
      %s113 = sphi 0, %s99
      %s117 = sphi 0, %s117
      %s119 = sphi 0, %s117
      %s120 = sphi 0, %s119
      %s134 = sphi 0, %s120
      %s138 = sphi 0, %s138
      %s140 = sphi 0, %s138
      %s141 = sphi 0, %s140
      %s155 = sphi 0, %s141
      %s161 = sphi 0, %s163
      %s164 = sphi 0, %s161
      %s165 = sphi 0, %s164
      %s181 = sphi 0, %s165
    $region4: #{tpu_custom_call.1} parent=1 // loop_header_branch
      %23 = sbr.rel (%p21) target = $region8
    $region5: #{tpu_custom_call.1} parent=1 // loop_body
      %s25 = ssub.s32 %s20, 1
      %s26 = ssub.s32 %s20, 2
      %s27 = sadd.s32 %s20, 1
      %s28 = ssub.s32 %s20, %s27
      %p29 = scmp.eq.s32.totalorder %s28, 0
      %s31 = sadd.s32 %s30, 1
      %s32 = scalar_select %p29, %s30, %s31
      %p35 = pneg %p29
      %p36 = scmp.eq.s32.totalorder %s20, 1
      %p37 = por %p35, %p36
      %p38 = scmp.ne.s32.totalorder %s30, %s33
      %p39 = scmp.eq.s32.totalorder %s20, 0
      %p40 = por %p38, %p39
      %p41 = scmp.ne.s32.totalorder %s30, %s33
      %p42 = scmp.eq.s32.totalorder %s25, 1
      %p43 = por %p41, %p42
      %p44 = scmp.ne.s32.totalorder %s33, %s34
      %p45 = scmp.eq.s32.totalorder %s25, 0
      %p46 = por %p44, %p45
      %p47 = scmp.ne.s32.totalorder %s33, %s34
      %p48 = scmp.eq.s32.totalorder %s26, 1
      %p49 = por %p47, %p48
      %p51 = scmp.ne.s32.totalorder %s34, %s50
      %p52 = scmp.eq.s32.totalorder %s26, 0
      %p53 = por %p51, %p52
      %s55 = sadd.s32 %s54, 1
      %p58 = scmp.eq.s32.totalorder %s20, 1
      %p59 = scmp.ne.s32.totalorder %s54, %s56
      %p60 = scmp.eq.s32.totalorder %s20, 0
      %p61 = por %p59, %p60
      %p62 = scmp.ne.s32.totalorder %s54, %s56
      %p63 = scmp.eq.s32.totalorder %s25, 1
      %p64 = por %p62, %p63
      %p65 = scmp.ne.s32.totalorder %s56, %s57
      %p66 = scmp.eq.s32.totalorder %s25, 0
      %p67 = por %p65, %p66
      %p68 = scmp.ne.s32.totalorder %s56, %s57
      %p69 = scmp.eq.s32.totalorder %s26, 1
      %p70 = por %p68, %p69
      %p72 = scmp.ne.s32.totalorder %s57, %s71
      %p73 = scmp.eq.s32.totalorder %s26, 0
      %p74 = por %p72, %p73
      %s76 = sadd.s32 %s75, 1
      %p79 = scmp.eq.s32.totalorder %s20, 1
      %p80 = scmp.ne.s32.totalorder %s75, %s77
      %p81 = scmp.eq.s32.totalorder %s20, 0
      %p82 = por %p80, %p81
      %p83 = scmp.ne.s32.totalorder %s75, %s77
      %p84 = scmp.eq.s32.totalorder %s25, 1
      %p85 = por %p83, %p84
      %p86 = scmp.ne.s32.totalorder %s77, %s78
      %p87 = scmp.eq.s32.totalorder %s25, 0
      %p88 = por %p86, %p87
      %p89 = scmp.ne.s32.totalorder %s77, %s78
      %p90 = scmp.eq.s32.totalorder %s26, 1
      %p91 = por %p89, %p90
      %p93 = scmp.ne.s32.totalorder %s78, %s92
      %p94 = scmp.eq.s32.totalorder %s26, 0
      %p95 = por %p93, %p94
      %s97 = sadd.s32 %s96, 1
      %p100 = scmp.eq.s32.totalorder %s20, 1
      %p101 = scmp.ne.s32.totalorder %s96, %s98
      %p102 = scmp.eq.s32.totalorder %s20, 0
      %p103 = por %p101, %p102
      %p104 = scmp.ne.s32.totalorder %s96, %s98
      %p105 = scmp.eq.s32.totalorder %s25, 1
      %p106 = por %p104, %p105
      %p107 = scmp.ne.s32.totalorder %s98, %s99
      %p108 = scmp.eq.s32.totalorder %s25, 0
      %p109 = por %p107, %p108
      %p110 = scmp.ne.s32.totalorder %s98, %s99
      %p111 = scmp.eq.s32.totalorder %s26, 1
      %p112 = por %p110, %p111
      %p114 = scmp.ne.s32.totalorder %s99, %s113
      %p115 = scmp.eq.s32.totalorder %s26, 0
      %p116 = por %p114, %p115
      %s118 = sadd.s32 %s117, 1
      %p121 = scmp.eq.s32.totalorder %s20, 1
      %p122 = scmp.ne.s32.totalorder %s117, %s119
      %p123 = scmp.eq.s32.totalorder %s20, 0
      %p124 = por %p122, %p123
      %p125 = scmp.ne.s32.totalorder %s117, %s119
      %p126 = scmp.eq.s32.totalorder %s25, 1
      %p127 = por %p125, %p126
      %p128 = scmp.ne.s32.totalorder %s119, %s120
      %p129 = scmp.eq.s32.totalorder %s25, 0
      %p130 = por %p128, %p129
      %p131 = scmp.ne.s32.totalorder %s119, %s120
      %p132 = scmp.eq.s32.totalorder %s26, 1
      %p133 = por %p131, %p132
      %p135 = scmp.ne.s32.totalorder %s120, %s134
      %p136 = scmp.eq.s32.totalorder %s26, 0
      %p137 = por %p135, %p136
      %s139 = sadd.s32 %s138, 1
      %p142 = scmp.eq.s32.totalorder %s20, 1
      %p143 = scmp.ne.s32.totalorder %s138, %s140
      %p144 = scmp.eq.s32.totalorder %s20, 0
      %p145 = por %p143, %p144
      %p146 = scmp.ne.s32.totalorder %s138, %s140
      %p147 = scmp.eq.s32.totalorder %s25, 1
      %p148 = por %p146, %p147
      %p149 = scmp.ne.s32.totalorder %s140, %s141
      %p150 = scmp.eq.s32.totalorder %s25, 0
      %p151 = por %p149, %p150
      %p152 = scmp.ne.s32.totalorder %s140, %s141
      %p153 = scmp.eq.s32.totalorder %s26, 1
      %p154 = por %p152, %p153
      %p156 = scmp.ne.s32.totalorder %s141, %s155
      %p157 = scmp.eq.s32.totalorder %s26, 0
      %p158 = por %p156, %p157
      %s159 = ssub.s32 %s20, %s27
      %p160 = scmp.eq.s32.totalorder %s159, 0
      %s162 = sadd.s32 %s161, 1
      %s163 = scalar_select %p160, %s161, %s162
      %p166 = pneg %p160
      %p167 = scmp.eq.s32.totalorder %s20, 1
      %p168 = por %p166, %p167
      %p169 = scmp.ne.s32.totalorder %s161, %s164
      %p170 = scmp.eq.s32.totalorder %s20, 0
      %p171 = por %p169, %p170
      %p172 = scmp.ne.s32.totalorder %s161, %s164
      %p173 = scmp.eq.s32.totalorder %s25, 1
      %p174 = por %p172, %p173
      %p175 = scmp.ne.s32.totalorder %s164, %s165
      %p176 = scmp.eq.s32.totalorder %s25, 0
      %p177 = por %p175, %p176
      %p178 = scmp.ne.s32.totalorder %s164, %s165
      %p179 = scmp.eq.s32.totalorder %s26, 1
      %p180 = por %p178, %p179
      %p182 = scmp.ne.s32.totalorder %s165, %s181
      %p183 = scmp.eq.s32.totalorder %s26, 0
      %p184 = por %p182, %p183
      %p185 = scmp.le.s32.totalorder 1, %s20
      %p186 = scmp.lt.s32.totalorder %s20, 3
      %p187 = pnand %p185, %p186
      %p188 = pneg %p187
      // Predicated region
      $region9: #{tpu_custom_call.1} parent=5 // pred_check
        _
      $region10: #{tpu_custom_call.1} parent=5 // pred_check_branch
        %190 = sbr.rel (%p187) target = $region12
      $region11: #{tpu_custom_call.1} parent=5 // pred_region
        %s191 = ssub.s32 %s20, 1
        // Predicated region
        $region13: #{tpu_custom_call.1} parent=11 // pred_check
          %p192 = pneg %p67
        $region14: #{tpu_custom_call.1} parent=11 // pred_check_branch
          %194 = sbr.rel (%p192) target = $region16
        $region15: #{tpu_custom_call.1} parent=11 // pred_region
          %s196 = ssub.s32 512, 512
          %197 = vsyncadd [#allocation6], %s196
          %s198 = sshll.u32 [#allocation5], 4
          %s199 = int_to_ptr.vmem [resolvable:$true] %s198
          %204 = dma.hbm_to_vmem [thread:$0]  %s1, 512, %s199, [#allocation6], 128, 128, 8
        $region16: #{tpu_custom_call.1} parent=11 // pred_fallthru
          _
        // Predicated region
        $region17: #{tpu_custom_call.1} parent=11 // pred_check
          %p205 = pneg %p88
        $region18: #{tpu_custom_call.1} parent=11 // pred_check_branch
          %207 = sbr.rel (%p205) target = $region20
        $region19: #{tpu_custom_call.1} parent=11 // pred_region
          _
        $region20: #{tpu_custom_call.1} parent=11 // pred_fallthru
          _
        // Predicated region
        $region21: #{tpu_custom_call.1} parent=11 // pred_check
          %p208 = pneg %p109
        $region22: #{tpu_custom_call.1} parent=11 // pred_check_branch
          %210 = sbr.rel (%p208) target = $region24
        $region23: #{tpu_custom_call.1} parent=11 // pred_region
          %s212 = ssub.s32 2048, 2048
          %213 = vsyncadd [#allocation6], %s212
          %s214 = sshll.u32 [#allocation7], 4
          %s215 = int_to_ptr.vmem [resolvable:$true] %s214
          %220 = dma.hbm_to_vmem [thread:$0]  %s3, 2048, %s215, [#allocation6], 128, 128, 8
        $region24: #{tpu_custom_call.1} parent=11 // pred_fallthru
          _
        // Predicated region
        $region25: #{tpu_custom_call.1} parent=11 // pred_check
          %p221 = pneg %p130
        $region26: #{tpu_custom_call.1} parent=11 // pred_check_branch
          %223 = sbr.rel (%p221) target = $region28
        $region27: #{tpu_custom_call.1} parent=11 // pred_region
          _
        $region28: #{tpu_custom_call.1} parent=11 // pred_fallthru
          _
        // Predicated region
        $region29: #{tpu_custom_call.1} parent=11 // pred_check
          %p224 = pneg %p151
        $region30: #{tpu_custom_call.1} parent=11 // pred_check_branch
          %226 = sbr.rel (%p224) target = $region32
        $region31: #{tpu_custom_call.1} parent=11 // pred_region
          %s228 = ssub.s32 512, 512
          %229 = vsyncadd [#allocation9], %s228
          %s230 = sshll.u32 [#allocation8], 4
          %s231 = int_to_ptr.vmem [resolvable:$true] %s230
          %236 = dma.hbm_to_vmem [thread:$0]  %s5, 512, %s231, [#allocation9], 128, 128, 8
        $region32: #{tpu_custom_call.1} parent=11 // pred_fallthru
          _
      $region12: #{tpu_custom_call.1} parent=5 // pred_fallthru
        _
      %p237 = scmp.lt.s32.totalorder %s20, 2
      // Predicated region
      $region33: #{tpu_custom_call.1} parent=5 // pred_check
        %p238 = pneg %p237
      $region34: #{tpu_custom_call.1} parent=5 // pred_check_branch
        %240 = sbr.rel (%p238) target = $region36
      $region35: #{tpu_custom_call.1} parent=5 // pred_region
        // Predicated region
        $region37: #{tpu_custom_call.1} parent=35 // pred_check
          %p241 = pneg %p40
        $region38: #{tpu_custom_call.1} parent=35 // pred_check_branch
          %243 = sbr.rel (%p241) target = $region40
        $region39: #{tpu_custom_call.1} parent=35 // pred_region
          %s244 = sand.u32 %s30, 1
          %s245 = scalar_lea.sflag [#allocation3], %s244
          %s246 = sand.u32 %s30, 1
          %s247 = smul.addr %s246, 8
          %s248 = scalar_lea.vmem [#allocation2], %s247
          %s250 = ssub.s32 128, 128
          %251 = vsyncadd %s245, %s250
          %s252 = smul.addr %s20, 128
          %s253 = scalar_lea.hbm %s0, %s252
          %s255 = sshll.u32 %s248, 4
          %s256 = int_to_ptr.vmem [resolvable:$true] %s255
          %258 = dma.hbm_to_vmem [thread:$0]  %s253, 128, %s256, %s245
        $region40: #{tpu_custom_call.1} parent=35 // pred_fallthru
          _
      $region36: #{tpu_custom_call.1} parent=5 // pred_fallthru
        _
      %p259 = scmp.le.s32.totalorder 1, %s20
      %p260 = scmp.lt.s32.totalorder %s20, 3
      %p261 = pnand %p259, %p260
      %p262 = pneg %p261
      // Predicated region
      $region41: #{tpu_custom_call.1} parent=5 // pred_check
        _
      $region42: #{tpu_custom_call.1} parent=5 // pred_check_branch
        %264 = sbr.rel (%p261) target = $region44
      $region43: #{tpu_custom_call.1} parent=5 // pred_region
        %s265 = ssub.s32 %s20, 1
        %s266 = sand.u32 %s33, 1
        %s267 = scalar_lea.sflag [#allocation3], %s266
        %s268 = sand.u32 %s33, 1
        %s269 = smul.addr %s268, 8
        %s270 = scalar_lea.vmem [#allocation2], %s269
        // Predicated region
        $region45: #{tpu_custom_call.1} parent=43 // pred_check
          %p271 = pneg %p46
        $region46: #{tpu_custom_call.1} parent=43 // pred_check_branch
          %273 = sbr.rel (%p271) target = $region48
        $region47: #{tpu_custom_call.1} parent=43 // pred_region
          %274 = dma.done %s267, 128
        $region48: #{tpu_custom_call.1} parent=43 // pred_fallthru
          _
        // Predicated region
        $region49: #{tpu_custom_call.1} parent=43 // pred_check
          %p275 = pneg %p67
        $region50: #{tpu_custom_call.1} parent=43 // pred_check_branch
          %277 = sbr.rel (%p275) target = $region52
        $region51: #{tpu_custom_call.1} parent=43 // pred_region
          %278 = dma.done [#allocation6], 512
        $region52: #{tpu_custom_call.1} parent=43 // pred_fallthru
          _
        // Predicated region
        $region53: #{tpu_custom_call.1} parent=43 // pred_check
          %p279 = pneg %p109
        $region54: #{tpu_custom_call.1} parent=43 // pred_check_branch
          %281 = sbr.rel (%p279) target = $region56
        $region55: #{tpu_custom_call.1} parent=43 // pred_region
          %282 = dma.done [#allocation6], 2048
        $region56: #{tpu_custom_call.1} parent=43 // pred_fallthru
          _
        // Predicated region
        $region57: #{tpu_custom_call.1} parent=43 // pred_check
          %p283 = pneg %p151
        $region58: #{tpu_custom_call.1} parent=43 // pred_check_branch
          %285 = sbr.rel (%p283) target = $region60
        $region59: #{tpu_custom_call.1} parent=43 // pred_region
          %286 = dma.done [#allocation9], 512
        $region60: #{tpu_custom_call.1} parent=43 // pred_fallthru
          _
        %s287 = sand.u32 %s33, 1
        %s288 = scalar_lea.sflag [#allocation3], %s287
        %s289 = sand.u32 %s33, 1
        %s290 = smul.addr %s289, 8
        %s291 = scalar_lea.vmem [#allocation2], %s290
        %p292 = pneg %p46
        %p293 = pneg %p43
        %p294 = pneg %p67
        %p295 = pneg %p64
        %p296 = pneg %p88
        %p297 = pneg %p85
        %p298 = pneg %p109
        %p299 = pneg %p106
        %p300 = pneg %p130
        %p301 = pneg %p127
        %p302 = pneg %p151
        %p303 = pneg %p148
        %p304 = pneg %p177
        %p305 = pneg %p174
        %s306 = sand.u32 %s164, 1
        %s307 = scalar_lea.sflag [#allocation4], %s306
        %s308 = sand.u32 %s164, 1
        %s309 = smul.addr %s308, 8
        %s310 = scalar_lea.vmem [#allocation10], %s309
        %v311 = vld [vmem:[%s270] sm:$0xff]
        %v312 = vmax.f32 %v311, 0.0
        %v313 = vld [vmem:[#allocation5] sm:$0xff]
        %v314 = vld [vmem:[#allocation5 + $0x8] sm:$0xff]
        %v315 = vld [vmem:[#allocation5 + $0x10] sm:$0xff]
        %v316 = vld [vmem:[#allocation5 + $0x18] sm:$0xff]
        %v317 = vld [vmem:[%s2] sm:$0x1]
        %v319 = vlaneseq
        %v320 = vshrl.u32 %v319, 7
        %v321 = vsub.s32 0, %v320
        %v322 = vrot.slane %v317, %v321
        %vm324 = vcmask 261120
        %v326 = vsel %vm324, %v312, 0
        %328 = vmatprep.subr.mxu0 0.0
        %329 = vmatpush1.msra.mxu0 0.0
        %330 = vmatprep.subr.mxu0 0.0
        %331 = vmatpush1.msra.mxu0 0.0
        %332 = vmatprep.subr.mxu0 0.0
        %333 = vmatpush1.msra.mxu0 0.0
        %334 = vmatprep.subr.mxu0 0.0
        %335 = vmatpush1.msra.mxu0 0.0
        %336 = vmatprep.subr.mxu0 0.0
        %337 = vmatpush1.msra.mxu0 0.0
        %338 = vmatprep.subr.mxu0 0.0
        %339 = vmatpush1.msra.mxu0 0.0
        %340 = vmatprep.subr.mxu0 0.0
        %341 = vmatpush1.msra.mxu0 0.0
        %342 = vmatprep.subr.mxu0 0.0
        %343 = vmatpush1.msra.mxu0 0.0
        %344 = vmatprep.subr.mxu0 0.0
        %345 = vmatpush1.msra.mxu0 0.0
        %346 = vmatprep.subr.mxu0 0.0
        %347 = vmatpush1.msra.mxu0 0.0
        %348 = vmatprep.subr.mxu0 0.0
        %349 = vmatpush1.msra.mxu0 0.0
        %350 = vmatprep.subr.mxu0 0.0
        %351 = vmatpush1.msra.mxu0 0.0
        %352 = vmatprep.subr.mxu0 0.0
        %353 = vmatpush1.msra.mxu0 %v316
        %354 = vmatprep.subr.mxu0 0.0
        %355 = vmatpush1.msra.mxu0 %v315
        %356 = vmatprep.subr.mxu0 0.0
        %357 = vmatpush1.msra.mxu0 %v314
        %358 = vmatprep.subr.mxu0 0.0
        %359 = vmatpush1.msra.mxu0 %v313
        %360 = vmatprep.subr.mxu0 0.0
        %361 = vmatpush2.msra.mxu0 0.0
        %362 = vmatprep.subr.mxu0 0.0
        %363 = vmatpush2.msra.mxu0 0.0
        %364 = vmatprep.subr.mxu0 0.0
        %365 = vmatpush2.msra.mxu0 0.0
        %366 = vmatprep.subr.mxu0 0.0
        %367 = vmatpush2.msra.mxu0 0.0
        %368 = vmatprep.subr.mxu0 0.0
        %369 = vmatpush2.msra.mxu0 0.0
        %370 = vmatprep.subr.mxu0 0.0
        %371 = vmatpush2.msra.mxu0 0.0
        %372 = vmatprep.subr.mxu0 0.0
        %373 = vmatpush2.msra.mxu0 0.0
        %374 = vmatprep.subr.mxu0 0.0
        %375 = vmatpush2.msra.mxu0 0.0
        %376 = vmatprep.subr.mxu0 0.0
        %377 = vmatpush2.msra.mxu0 0.0
        %378 = vmatprep.subr.mxu0 0.0
        %379 = vmatpush2.msra.mxu0 0.0
        %380 = vmatprep.subr.mxu0 0.0
        %381 = vmatpush2.msra.mxu0 0.0
        %382 = vmatprep.subr.mxu0 0.0
        %383 = vmatpush2.msra.mxu0 0.0
        %384 = vmatprep.subr.mxu0 0.0
        %385 = vmatpush2.msra.mxu0 0.0
        %386 = vmatprep.subr.mxu0 0.0
        %387 = vmatpush2.msra.mxu0 0.0
        %388 = vmatprep.subr.mxu0 0.0
        %389 = vmatpush2.msra.mxu0 0.0
        %390 = vmatprep.subr.mxu0 0.0
        %391 = vmatpush2.msra.mxu0 0.0
        %392 = vmatprep.mubr.f32.mxu0 0.0
        %393 = vmatmul.mubr.f32.gmra.mxu0 %v326
        %v394 = vpop.f32.mrf.mxu0
        %v395 = vadd.f32 %v322, %v394
        %v396 = vpop.f32.mrf.mxu0
        %397 = vdwg.mxu0
        %v398 = vmax.f32 %v395, 0.0
        %v399 = vld [vmem:[#allocation7] sm:$0xff]
        %v400 = vld [vmem:[#allocation7 + $0x8] sm:$0xff]
        %v401 = vld [vmem:[#allocation7 + $0x10] sm:$0xff]
        %v402 = vld [vmem:[#allocation7 + $0x18] sm:$0xff]
        %v403 = vld [vmem:[#allocation7 + $0x20] sm:$0xff]
        %v404 = vld [vmem:[#allocation7 + $0x28] sm:$0xff]
        %v405 = vld [vmem:[#allocation7 + $0x30] sm:$0xff]
        %v406 = vld [vmem:[#allocation7 + $0x38] sm:$0xff]
        %v407 = vld [vmem:[#allocation7 + $0x40] sm:$0xff]
        %v408 = vld [vmem:[#allocation7 + $0x48] sm:$0xff]
        %v409 = vld [vmem:[#allocation7 + $0x50] sm:$0xff]
        %v410 = vld [vmem:[#allocation7 + $0x58] sm:$0xff]
        %v411 = vld [vmem:[#allocation7 + $0x60] sm:$0xff]
        %v412 = vld [vmem:[#allocation7 + $0x68] sm:$0xff]
        %v413 = vld [vmem:[#allocation7 + $0x70] sm:$0xff]
        %v414 = vld [vmem:[#allocation7 + $0x78] sm:$0xff]
        %v415 = vld [vmem:[%s4] sm:$0x1]
        %v417 = vlaneseq
        %v418 = vshrl.u32 %v417, 7
        %v419 = vsub.s32 0, %v418
        %v420 = vrot.slane %v415, %v419
        %422 = vmatprep.subr.mxu0 0.0
        %423 = vmatpush1.msra.mxu0 %v414
        %424 = vmatprep.subr.mxu0 0.0
        %425 = vmatpush1.msra.mxu0 %v413
        %426 = vmatprep.subr.mxu0 0.0
        %427 = vmatpush1.msra.mxu0 %v412
        %428 = vmatprep.subr.mxu0 0.0
        %429 = vmatpush1.msra.mxu0 %v411
        %430 = vmatprep.subr.mxu0 0.0
        %431 = vmatpush1.msra.mxu0 %v410
        %432 = vmatprep.subr.mxu0 0.0
        %433 = vmatpush1.msra.mxu0 %v409
        %434 = vmatprep.subr.mxu0 0.0
        %435 = vmatpush1.msra.mxu0 %v408
        %436 = vmatprep.subr.mxu0 0.0
        %437 = vmatpush1.msra.mxu0 %v407
        %438 = vmatprep.subr.mxu0 0.0
        %439 = vmatpush1.msra.mxu0 %v406
        %440 = vmatprep.subr.mxu0 0.0
        %441 = vmatpush1.msra.mxu0 %v405
        %442 = vmatprep.subr.mxu0 0.0
        %443 = vmatpush1.msra.mxu0 %v404
        %444 = vmatprep.subr.mxu0 0.0
        %445 = vmatpush1.msra.mxu0 %v403
        %446 = vmatprep.subr.mxu0 0.0
        %447 = vmatpush1.msra.mxu0 %v402
        %448 = vmatprep.subr.mxu0 0.0
        %449 = vmatpush1.msra.mxu0 %v401
        %450 = vmatprep.subr.mxu0 0.0
        %451 = vmatpush1.msra.mxu0 %v400
        %452 = vmatprep.subr.mxu0 0.0
        %453 = vmatpush1.msra.mxu0 %v399
        %454 = vmatprep.subr.mxu0 0.0
        %455 = vmatpush2.msra.mxu0 0.0
        %456 = vmatprep.subr.mxu0 0.0
        %457 = vmatpush2.msra.mxu0 0.0
        %458 = vmatprep.subr.mxu0 0.0
        %459 = vmatpush2.msra.mxu0 0.0
        %460 = vmatprep.subr.mxu0 0.0
        %461 = vmatpush2.msra.mxu0 0.0
        %462 = vmatprep.subr.mxu0 0.0
        %463 = vmatpush2.msra.mxu0 0.0
        %464 = vmatprep.subr.mxu0 0.0
        %465 = vmatpush2.msra.mxu0 0.0
        %466 = vmatprep.subr.mxu0 0.0
        %467 = vmatpush2.msra.mxu0 0.0
        %468 = vmatprep.subr.mxu0 0.0
        %469 = vmatpush2.msra.mxu0 0.0
        %470 = vmatprep.subr.mxu0 0.0
        %471 = vmatpush2.msra.mxu0 0.0
        %472 = vmatprep.subr.mxu0 0.0
        %473 = vmatpush2.msra.mxu0 0.0
        %474 = vmatprep.subr.mxu0 0.0
        %475 = vmatpush2.msra.mxu0 0.0
        %476 = vmatprep.subr.mxu0 0.0
        %477 = vmatpush2.msra.mxu0 0.0
        %478 = vmatprep.subr.mxu0 0.0
        %479 = vmatpush2.msra.mxu0 0.0
        %480 = vmatprep.subr.mxu0 0.0
        %481 = vmatpush2.msra.mxu0 0.0
        %482 = vmatprep.subr.mxu0 0.0
        %483 = vmatpush2.msra.mxu0 0.0
        %484 = vmatprep.subr.mxu0 0.0
        %485 = vmatpush2.msra.mxu0 0.0
        %486 = vmatprep.mubr.f32.mxu0 0.0
        %487 = vmatmul.mubr.f32.gmra.mxu0 %v398
        %v488 = vpop.f32.mrf.mxu0
        %v489 = vadd.f32 %v420, %v488
        %v490 = vpop.f32.mrf.mxu0
        %491 = vdwg.mxu0
        %v492 = vld [vmem:[#allocation8] sm:$0xff]
        %v493 = vld [vmem:[#allocation8 + $0x8] sm:$0xff]
        %v494 = vld [vmem:[#allocation8 + $0x10] sm:$0xff]
        %v495 = vld [vmem:[#allocation8 + $0x18] sm:$0xff]
        %v497 = vsel %vm324, %v311, 0
        %499 = vmatprep.subr.mxu0 0.0
        %500 = vmatpush1.msra.mxu0 0.0
        %501 = vmatprep.subr.mxu0 0.0
        %502 = vmatpush1.msra.mxu0 0.0
        %503 = vmatprep.subr.mxu0 0.0
        %504 = vmatpush1.msra.mxu0 0.0
        %505 = vmatprep.subr.mxu0 0.0
        %506 = vmatpush1.msra.mxu0 0.0
        %507 = vmatprep.subr.mxu0 0.0
        %508 = vmatpush1.msra.mxu0 0.0
        %509 = vmatprep.subr.mxu0 0.0
        %510 = vmatpush1.msra.mxu0 0.0
        %511 = vmatprep.subr.mxu0 0.0
        %512 = vmatpush1.msra.mxu0 0.0
        %513 = vmatprep.subr.mxu0 0.0
        %514 = vmatpush1.msra.mxu0 0.0
        %515 = vmatprep.subr.mxu0 0.0
        %516 = vmatpush1.msra.mxu0 0.0
        %517 = vmatprep.subr.mxu0 0.0
        %518 = vmatpush1.msra.mxu0 0.0
        %519 = vmatprep.subr.mxu0 0.0
        %520 = vmatpush1.msra.mxu0 0.0
        %521 = vmatprep.subr.mxu0 0.0
        %522 = vmatpush1.msra.mxu0 0.0
        %523 = vmatprep.subr.mxu0 0.0
        %524 = vmatpush1.msra.mxu0 %v495
        %525 = vmatprep.subr.mxu0 0.0
        %526 = vmatpush1.msra.mxu0 %v494
        %527 = vmatprep.subr.mxu0 0.0
        %528 = vmatpush1.msra.mxu0 %v493
        %529 = vmatprep.subr.mxu0 0.0
        %530 = vmatpush1.msra.mxu0 %v492
        %531 = vmatprep.subr.mxu0 0.0
        %532 = vmatpush2.msra.mxu0 0.0
        %533 = vmatprep.subr.mxu0 0.0
        %534 = vmatpush2.msra.mxu0 0.0
        %535 = vmatprep.subr.mxu0 0.0
        %536 = vmatpush2.msra.mxu0 0.0
        %537 = vmatprep.subr.mxu0 0.0
        %538 = vmatpush2.msra.mxu0 0.0
        %539 = vmatprep.subr.mxu0 0.0
        %540 = vmatpush2.msra.mxu0 0.0
        %541 = vmatprep.subr.mxu0 0.0
        %542 = vmatpush2.msra.mxu0 0.0
        %543 = vmatprep.subr.mxu0 0.0
        %544 = vmatpush2.msra.mxu0 0.0
        %545 = vmatprep.subr.mxu0 0.0
        %546 = vmatpush2.msra.mxu0 0.0
        %547 = vmatprep.subr.mxu0 0.0
        %548 = vmatpush2.msra.mxu0 0.0
        %549 = vmatprep.subr.mxu0 0.0
        %550 = vmatpush2.msra.mxu0 0.0
        %551 = vmatprep.subr.mxu0 0.0
        %552 = vmatpush2.msra.mxu0 0.0
        %553 = vmatprep.subr.mxu0 0.0
        %554 = vmatpush2.msra.mxu0 0.0
        %555 = vmatprep.subr.mxu0 0.0
        %556 = vmatpush2.msra.mxu0 0.0
        %557 = vmatprep.subr.mxu0 0.0
        %558 = vmatpush2.msra.mxu0 0.0
        %559 = vmatprep.subr.mxu0 0.0
        %560 = vmatpush2.msra.mxu0 0.0
        %561 = vmatprep.subr.mxu0 0.0
        %562 = vmatpush2.msra.mxu0 0.0
        %563 = vmatprep.mubr.f32.mxu0 0.0
        %564 = vmatmul.mubr.f32.gmra.mxu0 %v497
        %v565 = vpop.f32.mrf.mxu0
        %v566 = vadd.f32 %v489, %v565
        %v567 = vpop.f32.mrf.mxu0
        %568 = vdwg.mxu0
        %569 = vst [vmem:[%s310] sm:$0xff] %v566
        %s570 = sand.u32 %s164, 1
        %s571 = scalar_lea.sflag [#allocation4], %s570
        %s572 = sand.u32 %s164, 1
        %s573 = smul.addr %s572, 8
        %s574 = scalar_lea.vmem [#allocation10], %s573
        // Predicated region
        $region61: #{tpu_custom_call.1} parent=43 // pred_check
          %p575 = pneg %p174
        $region62: #{tpu_custom_call.1} parent=43 // pred_check_branch
          %577 = sbr.rel (%p575) target = $region64
        $region63: #{tpu_custom_call.1} parent=43 // pred_region
          %s579 = ssub.s32 128, 128
          %580 = vsyncadd %s571, %s579
          %s581 = smul.addr %s25, 128
          %s582 = scalar_lea.hbm %s6, %s581
          %s584 = sshll.u32 %s574, 4
          %s585 = int_to_ptr.vmem [resolvable:$true] %s584
          %587 = dma.vmem_to_hbm [thread:$0]  %s585, 128, %s582, %s571
        $region64: #{tpu_custom_call.1} parent=43 // pred_fallthru
          _
      $region44: #{tpu_custom_call.1} parent=5 // pred_fallthru
        _
      %p588 = scmp.le.s32.totalorder 2, %s20
      // Predicated region
      $region65: #{tpu_custom_call.1} parent=5 // pred_check
        %p589 = pneg %p588
      $region66: #{tpu_custom_call.1} parent=5 // pred_check_branch
        %591 = sbr.rel (%p589) target = $region68
      $region67: #{tpu_custom_call.1} parent=5 // pred_region
        %s592 = ssub.s32 %s20, 2
        // Predicated region
        $region69: #{tpu_custom_call.1} parent=67 // pred_check
          %p593 = pneg %p180
        $region70: #{tpu_custom_call.1} parent=67 // pred_check_branch
          %595 = sbr.rel (%p593) target = $region72
        $region71: #{tpu_custom_call.1} parent=67 // pred_region
          %s596 = sand.u32 %s165, 1
          %s597 = scalar_lea.sflag [#allocation4], %s596
          %s598 = sand.u32 %s165, 1
          %s599 = smul.addr %s598, 8
          %s600 = scalar_lea.vmem [#allocation10], %s599
          %601 = dma.done %s597, 128
        $region72: #{tpu_custom_call.1} parent=67 // pred_fallthru
          _
      $region68: #{tpu_custom_call.1} parent=5 // pred_fallthru
        _
    $region6: #{tpu_custom_call.1} parent=1 // loop_footer
      %s24 = sadd.s32 1, %s20
    $region7: #{tpu_custom_call.1} parent=1 // loop_footer_branch
      %19 = sbr.rel target = $region3
    $region8: #{tpu_custom_call.1} parent=1 // loop_exit
      _
    %602 = vsyncpa [#allocation3], 1
    %s603 = scalar_lea.sflag [#allocation3], 1
    %604 = vsyncpa %s603, 1
    %605 = vsyncpa [#allocation6], 1
    %606 = vsyncpa [#allocation9], 1
    %607 = vsyncpa [#allocation4], 1
    %s608 = scalar_lea.sflag [#allocation4], 1
    %609 = vsyncpa %s608, 1

</llo_original>
